<compile_context>
chip_gen: v6e
topology: v6e:2x2x1
jax: 0.10.0
libtpu: 0.0.40
codegen_flags: <defaults>
</compile_context>

<pallas_src>
import jax
import jax.numpy as jnp
import numpy as np
from jax import lax
from jax.experimental import pallas as pl
from jax.experimental.pallas import tpu as pltpu


# ----------------------------------------------------------------------------
# Pallas GRU: single invocation, fused gates, in-kernel unrolled time loop.
# ----------------------------------------------------------------------------
def gru_forward_pallas(x_tbe, w_ih, w_hh, b_ih, b_hh):
    """x_tbe: (T, B, E) f32 time-major embedded inputs.

    Returns (outputs (B, T, H) batch_first, hidden (1, B, H)).
    """
    T, B, E = x_tbe.shape
    H = w_hh.shape[1]
    G = 3 * H
    Gp = ((G + 127) // 128) * 128          # lane-pad fused gate dim to 128 multiple
    pad = Gp - G

    # Fused, gate-packed weights (columns ordered r | z | n, PyTorch layout), pre-transposed.
    w_ih_f = jnp.pad(jnp.transpose(w_ih, (1, 0)), ((0, 0), (0, pad)))   # (E, Gp)
    w_hh_f = jnp.pad(jnp.transpose(w_hh, (1, 0)), ((0, 0), (0, pad)))   # (H, Gp)
    # b_ih fully folded; b_hh only r/z parts folded (b_hn must stay inside r*(.)).
    b_fold = b_ih + jnp.concatenate([b_hh[:2 * H], jnp.zeros((H,), b_hh.dtype)])
    b_fold = jnp.pad(b_fold, (0, pad)).reshape(1, Gp).astype(jnp.float32)
    b_hn = b_hh[2 * H:].reshape(1, H).astype(jnp.float32)

    # bf16 MXU operands, f32 accumulation & elementwise (v5e-safe).
    x_2d = x_tbe.reshape(T * B, E).astype(jnp.bfloat16)                 # contiguous reshape
    w_ih_f = w_ih_f.astype(jnp.bfloat16)
    w_hh_f = w_hh_f.astype(jnp.bfloat16)

    def kernel(x_ref, wih_ref, whh_ref, bi_ref, bhn_ref, out_ref, gi_ref):
        # ---- hoisted input projection: ONE (T*B,E)@(E,Gp) MXU matmul, lane-dense store ----
        gi_ref[...] = (jnp.dot(x_ref[...], wih_ref[...],
                               preferred_element_type=jnp.float32) + bi_ref[...])

        # ---- loop-invariants hoisted out of the recurrence ----
        whh = whh_ref[...]                                    # (H, Gp) bf16
        b_hn_b = jnp.broadcast_to(bhn_ref[...], (B, H))       # broadcast once, not per step

        def step(t, h):
            # Single fused hidden matmul per step: the only MXU push on the serial path.
            gh = jnp.dot(h.astype(jnp.bfloat16), whh,
                         preferred_element_type=jnp.float32)  # (B, Gp) f32
            row = pl.multiple_of(t * B, B)
            gi_t = gi_ref[pl.ds(row, B), :]                   # (B, Gp) strided vld, no relayout

            # One sigmoid over the packed r|z lanes (halves EUP pushes).
            rz = jax.nn.sigmoid(gi_t[:, :2 * H] + gh[:, :2 * H])
            r = rz[:, :H]
            z = rz[:, H:2 * H]
            n = jnp.tanh(gi_t[:, 2 * H:3 * H] + r * (gh[:, 2 * H:3 * H] + b_hn_b))
            h_new = (1.0 - z) * n + z * h
            out_ref[pl.ds(row, B), :] = h_new.astype(out_ref.dtype)
            return h_new

        h0 = jnp.zeros((B, H), jnp.float32)
        # TODO(synk): switch to partial unroll (unroll=4/8) once T grows beyond toy sizes.
        lax.fori_loop(0, T, step, h0, unroll=True)

    out_2d = pl.pallas_call(
        kernel,
        out_shape=jax.ShapeDtypeStruct((T * B, H), jnp.float32),
        in_specs=[pl.BlockSpec(memory_space=pltpu.MemorySpace.VMEM) for _ in range(5)],
        out_specs=pl.BlockSpec(memory_space=pltpu.MemorySpace.VMEM),
        scratch_shapes=[pltpu.VMEM((T * B, Gp), jnp.float32)],   # fused gi scratch
    )(x_2d, w_ih_f, w_hh_f, b_fold, b_hn)

    out_tbh = out_2d.reshape(T, B, H)
    outputs = jnp.transpose(out_tbh, (1, 0, 2))    # (B, T, H) batch_first
    hidden = out_tbh[-1][None, :, :]               # (num_layers*dirs=1, B, H)
    return outputs, hidden


# ----------------------------------------------------------------------------
# EncoderRNN forward (glue in plain JAX: embedding gather + eval-mode dropout).
# ----------------------------------------------------------------------------
def encoder_rnn_forward(params, input_seq):
    # Gather with transposed indices -> time-major (T, B, E) directly.
    embedded_tbe = jnp.take(params["embedding"], input_seq.T, axis=0)
    # TODO(synk): nn.Dropout(p=0.1) is identity in eval mode; training-mode dropout not implemented.
    outputs, hidden = gru_forward_pallas(
        embedded_tbe,
        params["w_ih"], params["w_hh"], params["b_ih"], params["b_hh"],
    )
    return outputs, hidden


# ----------------------------------------------------------------------------
# Pure-JAX references (lax.scan) for correctness checks.
# ----------------------------------------------------------------------------
def gru_forward_ref(embedded_bte, w_ih, w_hh, b_ih, b_hh, mxu_dtype=jnp.float32):
    B, T, E = embedded_bte.shape
    H = w_hh.shape[1]
    w_ih_t = w_ih.T.astype(mxu_dtype)
    w_hh_t = w_hh.T.astype(mxu_dtype)

    def step(h, x_t):
        gi = jnp.dot(x_t.astype(mxu_dtype), w_ih_t,
                     preferred_element_type=jnp.float32) + b_ih
        gh = jnp.dot(h.astype(mxu_dtype), w_hh_t,
                     preferred_element_type=jnp.float32) + b_hh
        i_r, i_z, i_n = gi[:, :H], gi[:, H:2 * H], gi[:, 2 * H:]
        h_r, h_z, h_n = gh[:, :H], gh[:, H:2 * H], gh[:, 2 * H:]
        r = jax.nn.sigmoid(i_r + h_r)
        z = jax.nn.sigmoid(i_z + h_z)
        n = jnp.tanh(i_n + r * h_n)
        h_new = (1.0 - z) * n + z * h
        return h_new, h_new

    h0 = jnp.zeros((B, H), jnp.float32)
    x_tbe = jnp.transpose(embedded_bte, (1, 0, 2))
    h_last, out_tbh = lax.scan(step, h0, x_tbe)
    return jnp.transpose(out_tbh, (1, 0, 2)), h_last[None]


if __name__ == "__main__":
    # Small shapes consistent with the module's forward.
    vocab_size = 20       # input_size
    embedding_dim = 32
    hidden_size = 32
    B, T = 4, 8

    key = jax.random.PRNGKey(0)
    k_emb, k_wih, k_whh, k_bih, k_bhh, k_seq = jax.random.split(key, 6)

    bound = 1.0 / np.sqrt(hidden_size)   # PyTorch GRU init range
    params = {
        "embedding": jax.random.normal(k_emb, (vocab_size, embedding_dim), jnp.float32),
        "w_ih": jax.random.uniform(k_wih, (3 * hidden_size, embedding_dim),
                                   jnp.float32, -bound, bound),
        "w_hh": jax.random.uniform(k_whh, (3 * hidden_size, hidden_size),
                                   jnp.float32, -bound, bound),
        "b_ih": jax.random.uniform(k_bih, (3 * hidden_size,), jnp.float32, -bound, bound),
        "b_hh": jax.random.uniform(k_bhh, (3 * hidden_size,), jnp.float32, -bound, bound),
    }

    input_seq = jax.random.randint(k_seq, (B, T), 0, vocab_size, jnp.int32)

    outputs, hidden = jax.jit(encoder_rnn_forward)(params, input_seq)
    outputs, hidden = jax.block_until_ready((outputs, hidden))

    assert outputs.shape == (B, T, hidden_size)
    assert hidden.shape == (1, B, hidden_size)

    embedded = jnp.take(params["embedding"], input_seq, axis=0)

    # Tight check vs a reference that uses the same bf16 MXU operands / f32 elementwise.
    ref_out_bf, ref_hid_bf = gru_forward_ref(
        embedded, params["w_ih"], params["w_hh"], params["b_ih"], params["b_hh"],
        mxu_dtype=jnp.bfloat16)
    np.testing.assert_allclose(np.asarray(outputs), np.asarray(ref_out_bf),
                               rtol=2e-3, atol=2e-3)
    np.testing.assert_allclose(np.asarray(hidden), np.asarray(ref_hid_bf),
                               rtol=2e-3, atol=2e-3)

    # Loose check vs the full-f32 reference (bf16 MXU operands in the kernel).
    ref_out_f32, ref_hid_f32 = gru_forward_ref(
        embedded, params["w_ih"], params["w_hh"], params["b_ih"], params["b_hh"],
        mxu_dtype=jnp.float32)
    np.testing.assert_allclose(np.asarray(outputs), np.asarray(ref_out_f32),
                               rtol=5e-2, atol=5e-2)
    np.testing.assert_allclose(np.asarray(hidden), np.asarray(ref_hid_f32),
                               rtol=5e-2, atol=5e-2)

    print("KERNEL_OK")
</pallas_src>

<mosaic_0001>
module attributes {stable_mosaic.version = 11 : i64} {
  func.func @kernel(%arg0: memref<32x32xbf16, #tpu.memory_space<vmem>>, %arg1: memref<32x128xbf16, #tpu.memory_space<vmem>>, %arg2: memref<32x128xbf16, #tpu.memory_space<vmem>>, %arg3: memref<1x128xf32, #tpu.memory_space<vmem>>, %arg4: memref<1x32xf32, #tpu.memory_space<vmem>>, %arg5: memref<32x32xf32, #tpu.memory_space<vmem>>, %arg6: memref<32x128xf32, #tpu.memory_space<vmem>>) attributes {dimension_semantics = [], scalar_prefetch = 0 : i64, scratch_operands = 1 : i64, tpu.core_type = #tpu.core_type<tc>} {
    %c0 = arith.constant 0 : index
    %c0_0 = arith.constant 0 : index
    %0 = vector.load %arg0[%c0, %c0_0] : memref<32x32xbf16, #tpu.memory_space<vmem>>, vector<32x32xbf16>
    %c0_1 = arith.constant 0 : index
    %c0_2 = arith.constant 0 : index
    %1 = vector.load %arg1[%c0_1, %c0_2] : memref<32x128xbf16, #tpu.memory_space<vmem>>, vector<32x128xbf16>
    %cst = arith.constant dense<0.000000e+00> : vector<32x128xf32>
    %2 = tpu.matmul %0, %1, %cst {dimension_numbers = #tpu.dot_dimension_numbers<[1], [0], [0], [1], [0, 0, 1, 1], [], []>} : vector<32x32xbf16>, vector<32x128xbf16>, vector<32x128xf32> -> vector<32x128xf32>
    %c0_3 = arith.constant 0 : index
    %c0_4 = arith.constant 0 : index
    %3 = vector.load %arg3[%c0_3, %c0_4] : memref<1x128xf32, #tpu.memory_space<vmem>>, vector<1x128xf32>
    %4 = vector.broadcast %3 : vector<1x128xf32> to vector<32x128xf32>
    %5 = arith.addf %2, %4 : vector<32x128xf32>
    %c0_5 = arith.constant 0 : index
    %c0_6 = arith.constant 0 : index
    %6 = vector.load %arg6[%c0_5, %c0_6] : memref<32x128xf32, #tpu.memory_space<vmem>>, vector<32x128xf32>
    tpu.vector_store %arg6[%c0_5, %c0_6], %5 {strides = array<i32>} : memref<32x128xf32, #tpu.memory_space<vmem>>, vector<32x128xf32>,
    %c0_7 = arith.constant 0 : index
    %c0_8 = arith.constant 0 : index
    %7 = vector.load %arg2[%c0_7, %c0_8] : memref<32x128xbf16, #tpu.memory_space<vmem>>, vector<32x128xbf16>
    %c0_9 = arith.constant 0 : index
    %c0_10 = arith.constant 0 : index
    %8 = vector.load %arg4[%c0_9, %c0_10] : memref<1x32xf32, #tpu.memory_space<vmem>>, vector<1x32xf32>
    %9 = vector.shape_cast %8 : vector<1x32xf32> to vector<1x32xf32>
    %10 = vector.broadcast %9 : vector<1x32xf32> to vector<4x32xf32>
    %cst_11 = arith.constant 0.000000e+00 : f32
    %11 = vector.broadcast %cst_11 : f32 to vector<4x32xf32>
    %c0_i32 = arith.constant 0 : i32
    %12 = arith.truncf %11 : vector<4x32xf32> to vector<4x32xbf16>
    %cst_12 = arith.constant dense<0.000000e+00> : vector<4x128xf32>
    %13 = tpu.matmul %12, %7, %cst_12 {dimension_numbers = #tpu.dot_dimension_numbers<[1], [0], [0], [1], [0, 0, 1, 1], [], []>} : vector<4x32xbf16>, vector<32x128xbf16>, vector<4x128xf32> -> vector<4x128xf32>
    %c4_i32 = arith.constant 4 : i32
    %14 = arith.muli %c0_i32, %c4_i32 : i32
    %15 = tpu.assume_multiple %14, 4 : i32
    %16 = arith.index_cast %15 : i32 to index
    %c0_13 = arith.constant 0 : index
    %17 = vector.load %arg6[%16, %c0_13] : memref<32x128xf32, #tpu.memory_space<vmem>>, vector<4x128xf32>
    %18 = vector.extract_strided_slice %17 {offsets = [0, 0], sizes = [4, 64], strides = [1, 1]} : vector<4x128xf32> to vector<4x64xf32>
    %19 = vector.extract_strided_slice %13 {offsets = [0, 0], sizes = [4, 64], strides = [1, 1]} : vector<4x128xf32> to vector<4x64xf32>
    %20 = arith.addf %18, %19 : vector<4x64xf32>
    %21 = arith.negf %20 : vector<4x64xf32>
    %22 = math.exp %21 : vector<4x64xf32>
    %cst_14 = arith.constant 1.000000e+00 : f32
    %23 = vector.broadcast %cst_14 : f32 to vector<4x64xf32>
    %24 = arith.addf %23, %22 : vector<4x64xf32>
    %25 = arith.divf %23, %24 : vector<4x64xf32>
    %26 = vector.extract_strided_slice %25 {offsets = [0, 0], sizes = [4, 32], strides = [1, 1]} : vector<4x64xf32> to vector<4x32xf32>
    %27 = vector.extract_strided_slice %25 {offsets = [0, 32], sizes = [4, 32], strides = [1, 1]} : vector<4x64xf32> to vector<4x32xf32>
    %28 = vector.extract_strided_slice %17 {offsets = [0, 64], sizes = [4, 32], strides = [1, 1]} : vector<4x128xf32> to vector<4x32xf32>
    %29 = vector.extract_strided_slice %13 {offsets = [0, 64], sizes = [4, 32], strides = [1, 1]} : vector<4x128xf32> to vector<4x32xf32>
    %30 = arith.addf %29, %10 : vector<4x32xf32>
    %31 = arith.mulf %26, %30 : vector<4x32xf32>
    %32 = arith.addf %28, %31 : vector<4x32xf32>
    %33 = math.tanh %32 : vector<4x32xf32>
    %cst_15 = arith.constant 1.000000e+00 : f32
    %34 = vector.broadcast %cst_15 : f32 to vector<4x32xf32>
    %35 = arith.subf %34, %27 : vector<4x32xf32>
    %36 = arith.mulf %35, %33 : vector<4x32xf32>
    %37 = arith.mulf %27, %11 : vector<4x32xf32>
    %38 = arith.addf %36, %37 : vector<4x32xf32>
    %39 = arith.index_cast %15 : i32 to index
    %c0_16 = arith.constant 0 : index
    %40 = vector.load %arg5[%39, %c0_16] : memref<32x32xf32, #tpu.memory_space<vmem>>, vector<4x32xf32>
    tpu.vector_store %arg5[%39, %c0_16], %38 {strides = array<i32>} : memref<32x32xf32, #tpu.memory_space<vmem>>, vector<4x32xf32>,
    %c1_i32 = arith.constant 1 : i32
    %41 = arith.truncf %38 : vector<4x32xf32> to vector<4x32xbf16>
    %cst_17 = arith.constant dense<0.000000e+00> : vector<4x128xf32>
    %42 = tpu.matmul %41, %7, %cst_17 {dimension_numbers = #tpu.dot_dimension_numbers<[1], [0], [0], [1], [0, 0, 1, 1], [], []>} : vector<4x32xbf16>, vector<32x128xbf16>, vector<4x128xf32> -> vector<4x128xf32>
    %c4_i32_18 = arith.constant 4 : i32
    %43 = arith.muli %c1_i32, %c4_i32_18 : i32
    %44 = tpu.assume_multiple %43, 4 : i32
    %45 = arith.index_cast %44 : i32 to index
    %c0_19 = arith.constant 0 : index
    %46 = vector.load %arg6[%45, %c0_19] : memref<32x128xf32, #tpu.memory_space<vmem>>, vector<4x128xf32>
    %47 = vector.extract_strided_slice %46 {offsets = [0, 0], sizes = [4, 64], strides = [1, 1]} : vector<4x128xf32> to vector<4x64xf32>
    %48 = vector.extract_strided_slice %42 {offsets = [0, 0], sizes = [4, 64], strides = [1, 1]} : vector<4x128xf32> to vector<4x64xf32>
    %49 = arith.addf %47, %48 : vector<4x64xf32>
    %50 = arith.negf %49 : vector<4x64xf32>
    %51 = math.exp %50 : vector<4x64xf32>
    %cst_20 = arith.constant 1.000000e+00 : f32
    %52 = vector.broadcast %cst_20 : f32 to vector<4x64xf32>
    %53 = arith.addf %52, %51 : vector<4x64xf32>
    %54 = arith.divf %52, %53 : vector<4x64xf32>
    %55 = vector.extract_strided_slice %54 {offsets = [0, 0], sizes = [4, 32], strides = [1, 1]} : vector<4x64xf32> to vector<4x32xf32>
    %56 = vector.extract_strided_slice %54 {offsets = [0, 32], sizes = [4, 32], strides = [1, 1]} : vector<4x64xf32> to vector<4x32xf32>
    %57 = vector.extract_strided_slice %46 {offsets = [0, 64], sizes = [4, 32], strides = [1, 1]} : vector<4x128xf32> to vector<4x32xf32>
    %58 = vector.extract_strided_slice %42 {offsets = [0, 64], sizes = [4, 32], strides = [1, 1]} : vector<4x128xf32> to vector<4x32xf32>
    %59 = arith.addf %58, %10 : vector<4x32xf32>
    %60 = arith.mulf %55, %59 : vector<4x32xf32>
    %61 = arith.addf %57, %60 : vector<4x32xf32>
    %62 = math.tanh %61 : vector<4x32xf32>
    %cst_21 = arith.constant 1.000000e+00 : f32
    %63 = vector.broadcast %cst_21 : f32 to vector<4x32xf32>
    %64 = arith.subf %63, %56 : vector<4x32xf32>
    %65 = arith.mulf %64, %62 : vector<4x32xf32>
    %66 = arith.mulf %56, %38 : vector<4x32xf32>
    %67 = arith.addf %65, %66 : vector<4x32xf32>
    %68 = arith.index_cast %44 : i32 to index
    %c0_22 = arith.constant 0 : index
    %69 = vector.load %arg5[%68, %c0_22] : memref<32x32xf32, #tpu.memory_space<vmem>>, vector<4x32xf32>
    tpu.vector_store %arg5[%68, %c0_22], %67 {strides = array<i32>} : memref<32x32xf32, #tpu.memory_space<vmem>>, vector<4x32xf32>,
    %c2_i32 = arith.constant 2 : i32
    %70 = arith.truncf %67 : vector<4x32xf32> to vector<4x32xbf16>
    %cst_23 = arith.constant dense<0.000000e+00> : vector<4x128xf32>
    %71 = tpu.matmul %70, %7, %cst_23 {dimension_numbers = #tpu.dot_dimension_numbers<[1], [0], [0], [1], [0, 0, 1, 1], [], []>} : vector<4x32xbf16>, vector<32x128xbf16>, vector<4x128xf32> -> vector<4x128xf32>
    %c4_i32_24 = arith.constant 4 : i32
    %72 = arith.muli %c2_i32, %c4_i32_24 : i32
    %73 = tpu.assume_multiple %72, 4 : i32
    %74 = arith.index_cast %73 : i32 to index
    %c0_25 = arith.constant 0 : index
    %75 = vector.load %arg6[%74, %c0_25] : memref<32x128xf32, #tpu.memory_space<vmem>>, vector<4x128xf32>
    %76 = vector.extract_strided_slice %75 {offsets = [0, 0], sizes = [4, 64], strides = [1, 1]} : vector<4x128xf32> to vector<4x64xf32>
    %77 = vector.extract_strided_slice %71 {offsets = [0, 0], sizes = [4, 64], strides = [1, 1]} : vector<4x128xf32> to vector<4x64xf32>
    %78 = arith.addf %76, %77 : vector<4x64xf32>
    %79 = arith.negf %78 : vector<4x64xf32>
    %80 = math.exp %79 : vector<4x64xf32>
    %cst_26 = arith.constant 1.000000e+00 : f32
    %81 = vector.broadcast %cst_26 : f32 to vector<4x64xf32>
    %82 = arith.addf %81, %80 : vector<4x64xf32>
    %83 = arith.divf %81, %82 : vector<4x64xf32>
    %84 = vector.extract_strided_slice %83 {offsets = [0, 0], sizes = [4, 32], strides = [1, 1]} : vector<4x64xf32> to vector<4x32xf32>
    %85 = vector.extract_strided_slice %83 {offsets = [0, 32], sizes = [4, 32], strides = [1, 1]} : vector<4x64xf32> to vector<4x32xf32>
    %86 = vector.extract_strided_slice %75 {offsets = [0, 64], sizes = [4, 32], strides = [1, 1]} : vector<4x128xf32> to vector<4x32xf32>
    %87 = vector.extract_strided_slice %71 {offsets = [0, 64], sizes = [4, 32], strides = [1, 1]} : vector<4x128xf32> to vector<4x32xf32>
    %88 = arith.addf %87, %10 : vector<4x32xf32>
    %89 = arith.mulf %84, %88 : vector<4x32xf32>
    %90 = arith.addf %86, %89 : vector<4x32xf32>
    %91 = math.tanh %90 : vector<4x32xf32>
    %cst_27 = arith.constant 1.000000e+00 : f32
    %92 = vector.broadcast %cst_27 : f32 to vector<4x32xf32>
    %93 = arith.subf %92, %85 : vector<4x32xf32>
    %94 = arith.mulf %93, %91 : vector<4x32xf32>
    %95 = arith.mulf %85, %67 : vector<4x32xf32>
    %96 = arith.addf %94, %95 : vector<4x32xf32>
    %97 = arith.index_cast %73 : i32 to index
    %c0_28 = arith.constant 0 : index
    %98 = vector.load %arg5[%97, %c0_28] : memref<32x32xf32, #tpu.memory_space<vmem>>, vector<4x32xf32>
    tpu.vector_store %arg5[%97, %c0_28], %96 {strides = array<i32>} : memref<32x32xf32, #tpu.memory_space<vmem>>, vector<4x32xf32>,
    %c3_i32 = arith.constant 3 : i32
    %99 = arith.truncf %96 : vector<4x32xf32> to vector<4x32xbf16>
    %cst_29 = arith.constant dense<0.000000e+00> : vector<4x128xf32>
    %100 = tpu.matmul %99, %7, %cst_29 {dimension_numbers = #tpu.dot_dimension_numbers<[1], [0], [0], [1], [0, 0, 1, 1], [], []>} : vector<4x32xbf16>, vector<32x128xbf16>, vector<4x128xf32> -> vector<4x128xf32>
    %c4_i32_30 = arith.constant 4 : i32
    %101 = arith.muli %c3_i32, %c4_i32_30 : i32
    %102 = tpu.assume_multiple %101, 4 : i32
    %103 = arith.index_cast %102 : i32 to index
    %c0_31 = arith.constant 0 : index
    %104 = vector.load %arg6[%103, %c0_31] : memref<32x128xf32, #tpu.memory_space<vmem>>, vector<4x128xf32>
    %105 = vector.extract_strided_slice %104 {offsets = [0, 0], sizes = [4, 64], strides = [1, 1]} : vector<4x128xf32> to vector<4x64xf32>
    %106 = vector.extract_strided_slice %100 {offsets = [0, 0], sizes = [4, 64], strides = [1, 1]} : vector<4x128xf32> to vector<4x64xf32>
    %107 = arith.addf %105, %106 : vector<4x64xf32>
    %108 = arith.negf %107 : vector<4x64xf32>
    %109 = math.exp %108 : vector<4x64xf32>
    %cst_32 = arith.constant 1.000000e+00 : f32
    %110 = vector.broadcast %cst_32 : f32 to vector<4x64xf32>
    %111 = arith.addf %110, %109 : vector<4x64xf32>
    %112 = arith.divf %110, %111 : vector<4x64xf32>
    %113 = vector.extract_strided_slice %112 {offsets = [0, 0], sizes = [4, 32], strides = [1, 1]} : vector<4x64xf32> to vector<4x32xf32>
    %114 = vector.extract_strided_slice %112 {offsets = [0, 32], sizes = [4, 32], strides = [1, 1]} : vector<4x64xf32> to vector<4x32xf32>
    %115 = vector.extract_strided_slice %104 {offsets = [0, 64], sizes = [4, 32], strides = [1, 1]} : vector<4x128xf32> to vector<4x32xf32>
    %116 = vector.extract_strided_slice %100 {offsets = [0, 64], sizes = [4, 32], strides = [1, 1]} : vector<4x128xf32> to vector<4x32xf32>
    %117 = arith.addf %116, %10 : vector<4x32xf32>
    %118 = arith.mulf %113, %117 : vector<4x32xf32>
    %119 = arith.addf %115, %118 : vector<4x32xf32>
    %120 = math.tanh %119 : vector<4x32xf32>
    %cst_33 = arith.constant 1.000000e+00 : f32
    %121 = vector.broadcast %cst_33 : f32 to vector<4x32xf32>
    %122 = arith.subf %121, %114 : vector<4x32xf32>
    %123 = arith.mulf %122, %120 : vector<4x32xf32>
    %124 = arith.mulf %114, %96 : vector<4x32xf32>
    %125 = arith.addf %123, %124 : vector<4x32xf32>
    %126 = arith.index_cast %102 : i32 to index
    %c0_34 = arith.constant 0 : index
    %127 = vector.load %arg5[%126, %c0_34] : memref<32x32xf32, #tpu.memory_space<vmem>>, vector<4x32xf32>
    tpu.vector_store %arg5[%126, %c0_34], %125 {strides = array<i32>} : memref<32x32xf32, #tpu.memory_space<vmem>>, vector<4x32xf32>,
    %c4_i32_35 = arith.constant 4 : i32
    %128 = arith.truncf %125 : vector<4x32xf32> to vector<4x32xbf16>
    %cst_36 = arith.constant dense<0.000000e+00> : vector<4x128xf32>
    %129 = tpu.matmul %128, %7, %cst_36 {dimension_numbers = #tpu.dot_dimension_numbers<[1], [0], [0], [1], [0, 0, 1, 1], [], []>} : vector<4x32xbf16>, vector<32x128xbf16>, vector<4x128xf32> -> vector<4x128xf32>
    %c4_i32_37 = arith.constant 4 : i32
    %130 = arith.muli %c4_i32_35, %c4_i32_37 : i32
    %131 = tpu.assume_multiple %130, 4 : i32
    %132 = arith.index_cast %131 : i32 to index
    %c0_38 = arith.constant 0 : index
    %133 = vector.load %arg6[%132, %c0_38] : memref<32x128xf32, #tpu.memory_space<vmem>>, vector<4x128xf32>
    %134 = vector.extract_strided_slice %133 {offsets = [0, 0], sizes = [4, 64], strides = [1, 1]} : vector<4x128xf32> to vector<4x64xf32>
    %135 = vector.extract_strided_slice %129 {offsets = [0, 0], sizes = [4, 64], strides = [1, 1]} : vector<4x128xf32> to vector<4x64xf32>
    %136 = arith.addf %134, %135 : vector<4x64xf32>
    %137 = arith.negf %136 : vector<4x64xf32>
    %138 = math.exp %137 : vector<4x64xf32>
    %cst_39 = arith.constant 1.000000e+00 : f32
    %139 = vector.broadcast %cst_39 : f32 to vector<4x64xf32>
    %140 = arith.addf %139, %138 : vector<4x64xf32>
    %141 = arith.divf %139, %140 : vector<4x64xf32>
    %142 = vector.extract_strided_slice %141 {offsets = [0, 0], sizes = [4, 32], strides = [1, 1]} : vector<4x64xf32> to vector<4x32xf32>
    %143 = vector.extract_strided_slice %141 {offsets = [0, 32], sizes = [4, 32], strides = [1, 1]} : vector<4x64xf32> to vector<4x32xf32>
    %144 = vector.extract_strided_slice %133 {offsets = [0, 64], sizes = [4, 32], strides = [1, 1]} : vector<4x128xf32> to vector<4x32xf32>
    %145 = vector.extract_strided_slice %129 {offsets = [0, 64], sizes = [4, 32], strides = [1, 1]} : vector<4x128xf32> to vector<4x32xf32>
    %146 = arith.addf %145, %10 : vector<4x32xf32>
    %147 = arith.mulf %142, %146 : vector<4x32xf32>
    %148 = arith.addf %144, %147 : vector<4x32xf32>
    %149 = math.tanh %148 : vector<4x32xf32>
    %cst_40 = arith.constant 1.000000e+00 : f32
    %150 = vector.broadcast %cst_40 : f32 to vector<4x32xf32>
    %151 = arith.subf %150, %143 : vector<4x32xf32>
    %152 = arith.mulf %151, %149 : vector<4x32xf32>
    %153 = arith.mulf %143, %125 : vector<4x32xf32>
    %154 = arith.addf %152, %153 : vector<4x32xf32>
    %155 = arith.index_cast %131 : i32 to index
    %c0_41 = arith.constant 0 : index
    %156 = vector.load %arg5[%155, %c0_41] : memref<32x32xf32, #tpu.memory_space<vmem>>, vector<4x32xf32>
    tpu.vector_store %arg5[%155, %c0_41], %154 {strides = array<i32>} : memref<32x32xf32, #tpu.memory_space<vmem>>, vector<4x32xf32>,
    %c5_i32 = arith.constant 5 : i32
    %157 = arith.truncf %154 : vector<4x32xf32> to vector<4x32xbf16>
    %cst_42 = arith.constant dense<0.000000e+00> : vector<4x128xf32>
    %158 = tpu.matmul %157, %7, %cst_42 {dimension_numbers = #tpu.dot_dimension_numbers<[1], [0], [0], [1], [0, 0, 1, 1], [], []>} : vector<4x32xbf16>, vector<32x128xbf16>, vector<4x128xf32> -> vector<4x128xf32>
    %c4_i32_43 = arith.constant 4 : i32
    %159 = arith.muli %c5_i32, %c4_i32_43 : i32
    %160 = tpu.assume_multiple %159, 4 : i32
    %161 = arith.index_cast %160 : i32 to index
    %c0_44 = arith.constant 0 : index
    %162 = vector.load %arg6[%161, %c0_44] : memref<32x128xf32, #tpu.memory_space<vmem>>, vector<4x128xf32>
    %163 = vector.extract_strided_slice %162 {offsets = [0, 0], sizes = [4, 64], strides = [1, 1]} : vector<4x128xf32> to vector<4x64xf32>
    %164 = vector.extract_strided_slice %158 {offsets = [0, 0], sizes = [4, 64], strides = [1, 1]} : vector<4x128xf32> to vector<4x64xf32>
    %165 = arith.addf %163, %164 : vector<4x64xf32>
    %166 = arith.negf %165 : vector<4x64xf32>
    %167 = math.exp %166 : vector<4x64xf32>
    %cst_45 = arith.constant 1.000000e+00 : f32
    %168 = vector.broadcast %cst_45 : f32 to vector<4x64xf32>
    %169 = arith.addf %168, %167 : vector<4x64xf32>
    %170 = arith.divf %168, %169 : vector<4x64xf32>
    %171 = vector.extract_strided_slice %170 {offsets = [0, 0], sizes = [4, 32], strides = [1, 1]} : vector<4x64xf32> to vector<4x32xf32>
    %172 = vector.extract_strided_slice %170 {offsets = [0, 32], sizes = [4, 32], strides = [1, 1]} : vector<4x64xf32> to vector<4x32xf32>
    %173 = vector.extract_strided_slice %162 {offsets = [0, 64], sizes = [4, 32], strides = [1, 1]} : vector<4x128xf32> to vector<4x32xf32>
    %174 = vector.extract_strided_slice %158 {offsets = [0, 64], sizes = [4, 32], strides = [1, 1]} : vector<4x128xf32> to vector<4x32xf32>
    %175 = arith.addf %174, %10 : vector<4x32xf32>
    %176 = arith.mulf %171, %175 : vector<4x32xf32>
    %177 = arith.addf %173, %176 : vector<4x32xf32>
    %178 = math.tanh %177 : vector<4x32xf32>
    %cst_46 = arith.constant 1.000000e+00 : f32
    %179 = vector.broadcast %cst_46 : f32 to vector<4x32xf32>
    %180 = arith.subf %179, %172 : vector<4x32xf32>
    %181 = arith.mulf %180, %178 : vector<4x32xf32>
    %182 = arith.mulf %172, %154 : vector<4x32xf32>
    %183 = arith.addf %181, %182 : vector<4x32xf32>
    %184 = arith.index_cast %160 : i32 to index
    %c0_47 = arith.constant 0 : index
    %185 = vector.load %arg5[%184, %c0_47] : memref<32x32xf32, #tpu.memory_space<vmem>>, vector<4x32xf32>
    tpu.vector_store %arg5[%184, %c0_47], %183 {strides = array<i32>} : memref<32x32xf32, #tpu.memory_space<vmem>>, vector<4x32xf32>,
    %c6_i32 = arith.constant 6 : i32
    %186 = arith.truncf %183 : vector<4x32xf32> to vector<4x32xbf16>
    %cst_48 = arith.constant dense<0.000000e+00> : vector<4x128xf32>
    %187 = tpu.matmul %186, %7, %cst_48 {dimension_numbers = #tpu.dot_dimension_numbers<[1], [0], [0], [1], [0, 0, 1, 1], [], []>} : vector<4x32xbf16>, vector<32x128xbf16>, vector<4x128xf32> -> vector<4x128xf32>
    %c4_i32_49 = arith.constant 4 : i32
    %188 = arith.muli %c6_i32, %c4_i32_49 : i32
    %189 = tpu.assume_multiple %188, 4 : i32
    %190 = arith.index_cast %189 : i32 to index
    %c0_50 = arith.constant 0 : index
    %191 = vector.load %arg6[%190, %c0_50] : memref<32x128xf32, #tpu.memory_space<vmem>>, vector<4x128xf32>
    %192 = vector.extract_strided_slice %191 {offsets = [0, 0], sizes = [4, 64], strides = [1, 1]} : vector<4x128xf32> to vector<4x64xf32>
    %193 = vector.extract_strided_slice %187 {offsets = [0, 0], sizes = [4, 64], strides = [1, 1]} : vector<4x128xf32> to vector<4x64xf32>
    %194 = arith.addf %192, %193 : vector<4x64xf32>
    %195 = arith.negf %194 : vector<4x64xf32>
    %196 = math.exp %195 : vector<4x64xf32>
    %cst_51 = arith.constant 1.000000e+00 : f32
    %197 = vector.broadcast %cst_51 : f32 to vector<4x64xf32>
    %198 = arith.addf %197, %196 : vector<4x64xf32>
    %199 = arith.divf %197, %198 : vector<4x64xf32>
    %200 = vector.extract_strided_slice %199 {offsets = [0, 0], sizes = [4, 32], strides = [1, 1]} : vector<4x64xf32> to vector<4x32xf32>
    %201 = vector.extract_strided_slice %199 {offsets = [0, 32], sizes = [4, 32], strides = [1, 1]} : vector<4x64xf32> to vector<4x32xf32>
    %202 = vector.extract_strided_slice %191 {offsets = [0, 64], sizes = [4, 32], strides = [1, 1]} : vector<4x128xf32> to vector<4x32xf32>
    %203 = vector.extract_strided_slice %187 {offsets = [0, 64], sizes = [4, 32], strides = [1, 1]} : vector<4x128xf32> to vector<4x32xf32>
    %204 = arith.addf %203, %10 : vector<4x32xf32>
    %205 = arith.mulf %200, %204 : vector<4x32xf32>
    %206 = arith.addf %202, %205 : vector<4x32xf32>
    %207 = math.tanh %206 : vector<4x32xf32>
    %cst_52 = arith.constant 1.000000e+00 : f32
    %208 = vector.broadcast %cst_52 : f32 to vector<4x32xf32>
    %209 = arith.subf %208, %201 : vector<4x32xf32>
    %210 = arith.mulf %209, %207 : vector<4x32xf32>
    %211 = arith.mulf %201, %183 : vector<4x32xf32>
    %212 = arith.addf %210, %211 : vector<4x32xf32>
    %213 = arith.index_cast %189 : i32 to index
    %c0_53 = arith.constant 0 : index
    %214 = vector.load %arg5[%213, %c0_53] : memref<32x32xf32, #tpu.memory_space<vmem>>, vector<4x32xf32>
    tpu.vector_store %arg5[%213, %c0_53], %212 {strides = array<i32>} : memref<32x32xf32, #tpu.memory_space<vmem>>, vector<4x32xf32>,
    %c7_i32 = arith.constant 7 : i32
    %215 = arith.truncf %212 : vector<4x32xf32> to vector<4x32xbf16>
    %cst_54 = arith.constant dense<0.000000e+00> : vector<4x128xf32>
    %216 = tpu.matmul %215, %7, %cst_54 {dimension_numbers = #tpu.dot_dimension_numbers<[1], [0], [0], [1], [0, 0, 1, 1], [], []>} : vector<4x32xbf16>, vector<32x128xbf16>, vector<4x128xf32> -> vector<4x128xf32>
    %c4_i32_55 = arith.constant 4 : i32
    %217 = arith.muli %c7_i32, %c4_i32_55 : i32
    %218 = tpu.assume_multiple %217, 4 : i32
    %219 = arith.index_cast %218 : i32 to index
    %c0_56 = arith.constant 0 : index
    %220 = vector.load %arg6[%219, %c0_56] : memref<32x128xf32, #tpu.memory_space<vmem>>, vector<4x128xf32>
    %221 = vector.extract_strided_slice %220 {offsets = [0, 0], sizes = [4, 64], strides = [1, 1]} : vector<4x128xf32> to vector<4x64xf32>
    %222 = vector.extract_strided_slice %216 {offsets = [0, 0], sizes = [4, 64], strides = [1, 1]} : vector<4x128xf32> to vector<4x64xf32>
    %223 = arith.addf %221, %222 : vector<4x64xf32>
    %224 = arith.negf %223 : vector<4x64xf32>
    %225 = math.exp %224 : vector<4x64xf32>
    %cst_57 = arith.constant 1.000000e+00 : f32
    %226 = vector.broadcast %cst_57 : f32 to vector<4x64xf32>
    %227 = arith.addf %226, %225 : vector<4x64xf32>
    %228 = arith.divf %226, %227 : vector<4x64xf32>
    %229 = vector.extract_strided_slice %228 {offsets = [0, 0], sizes = [4, 32], strides = [1, 1]} : vector<4x64xf32> to vector<4x32xf32>
    %230 = vector.extract_strided_slice %228 {offsets = [0, 32], sizes = [4, 32], strides = [1, 1]} : vector<4x64xf32> to vector<4x32xf32>
    %231 = vector.extract_strided_slice %220 {offsets = [0, 64], sizes = [4, 32], strides = [1, 1]} : vector<4x128xf32> to vector<4x32xf32>
    %232 = vector.extract_strided_slice %216 {offsets = [0, 64], sizes = [4, 32], strides = [1, 1]} : vector<4x128xf32> to vector<4x32xf32>
    %233 = arith.addf %232, %10 : vector<4x32xf32>
    %234 = arith.mulf %229, %233 : vector<4x32xf32>
    %235 = arith.addf %231, %234 : vector<4x32xf32>
    %236 = math.tanh %235 : vector<4x32xf32>
    %cst_58 = arith.constant 1.000000e+00 : f32
    %237 = vector.broadcast %cst_58 : f32 to vector<4x32xf32>
    %238 = arith.subf %237, %230 : vector<4x32xf32>
    %239 = arith.mulf %238, %236 : vector<4x32xf32>
    %240 = arith.mulf %230, %212 : vector<4x32xf32>
    %241 = arith.addf %239, %240 : vector<4x32xf32>
    %242 = arith.index_cast %218 : i32 to index
    %c0_59 = arith.constant 0 : index
    %243 = vector.load %arg5[%242, %c0_59] : memref<32x32xf32, #tpu.memory_space<vmem>>, vector<4x32xf32>
    tpu.vector_store %arg5[%242, %c0_59], %241 {strides = array<i32>} : memref<32x32xf32, #tpu.memory_space<vmem>>, vector<4x32xf32>,
    %c8_i32 = arith.constant 8 : i32
    return
  }
}

</mosaic_0001>

<llo_original>
// kernel: encoder_rnn_forward.1
$region0: #{encoder_rnn_forward.1}
  #allocation0 [shape = 'u32[]', space=smem, size = 0x4, offset = 0x4, fixed_abs, tag = 'smem constant byte address 0x4 - core index']
  #allocation1 [shape = 'u32[144,128]{1,0:T(1,128)}', space=vmem, size = 0x12000, scoped, tag = 'internal scratch']
  #allocation2 [shape = 'f32[32,128]{1,0:T(8,128)}', space=vmem, size = 0x4000, scoped, tag = 'scratch operand']
  %s0 = inlined_call_operand.vmem [shape: bf16[32,32], index: 0, kind: input, shape index: {}]
  %s1 = inlined_call_operand.vmem [shape: bf16[32,128], index: 1, kind: input, shape index: {}]
  %s2 = inlined_call_operand.vmem [shape: bf16[32,128], index: 2, kind: input, shape index: {}]
  %s3 = inlined_call_operand.vmem [shape: f32[1,128], index: 3, kind: input, shape index: {}]
  %s4 = inlined_call_operand.vmem [shape: f32[1,32], index: 4, kind: input, shape index: {}]
  %s5 = inlined_call_operand.vmem [shape: f32[32,32], index: 5, kind: output, shape index: {}]
  %s6 = sld [smem:[#allocation0]]
  $region30: #{encoder_rnn_forward.1} parent=0
    _
  %s8 = ssub.s32 1, %s6
  %s9 = scalar_select 0, %s8, %s6
  // Predicated region
  $region2: #{encoder_rnn_forward.1} parent=0 // pred_check
    _
  $region3: #{encoder_rnn_forward.1} parent=0 // pred_check_branch
    %11 = sbr.rel (0) target = $region5
  $region4: #{encoder_rnn_forward.1} parent=0 // pred_region
    _
  $region5: #{encoder_rnn_forward.1} parent=0 // pred_fallthru
    _
  // Predicated region
  $region6: #{encoder_rnn_forward.1} parent=0 // pred_check
    _
  $region7: #{encoder_rnn_forward.1} parent=0 // pred_check_branch
    %13 = sbr.rel (0) target = $region9
  $region8: #{encoder_rnn_forward.1} parent=0 // pred_region
    _
  $region9: #{encoder_rnn_forward.1} parent=0 // pred_fallthru
    _
  // Predicated region
  $region10: #{encoder_rnn_forward.1} parent=0 // pred_check
    _
  $region11: #{encoder_rnn_forward.1} parent=0 // pred_check_branch
    %15 = sbr.rel (0) target = $region13
  $region12: #{encoder_rnn_forward.1} parent=0 // pred_region
    _
  $region13: #{encoder_rnn_forward.1} parent=0 // pred_fallthru
    _
  // Predicated region
  $region14: #{encoder_rnn_forward.1} parent=0 // pred_check
    _
  $region15: #{encoder_rnn_forward.1} parent=0 // pred_check_branch
    %17 = sbr.rel (0) target = $region17
  $region16: #{encoder_rnn_forward.1} parent=0 // pred_region
    _
  $region17: #{encoder_rnn_forward.1} parent=0 // pred_fallthru
    _
  // Predicated region
  $region18: #{encoder_rnn_forward.1} parent=0 // pred_check
    _
  $region19: #{encoder_rnn_forward.1} parent=0 // pred_check_branch
    %19 = sbr.rel (0) target = $region21
  $region20: #{encoder_rnn_forward.1} parent=0 // pred_region
    _
  $region21: #{encoder_rnn_forward.1} parent=0 // pred_fallthru
    _
  %v21 = vld [vmem:[%s0] sm:$0xf]
  %v22 = vld [vmem:[%s0 + $0x4] sm:$0xf]
  %v23 = vld [vmem:[%s0 + $0x8] sm:$0xf]
  %v24 = vld [vmem:[%s0 + $0xc] sm:$0xf]
  %v25 = vld [vmem:[%s1] sm:$0xf]
  %v26 = vld [vmem:[%s1 + $0x4] sm:$0xf]
  %v27 = vld [vmem:[%s1 + $0x8] sm:$0xf]
  %v28 = vld [vmem:[%s1 + $0xc] sm:$0xf]
  %v29 = vld [vmem:[%s3] sm:$0x1]
  %v31 = vlaneseq
  %v32 = vshrl.u32 %v31, 7
  %v33 = vsub.s32 0, %v32
  %v34 = vrot.slane %v29, %v33
  %v40 = vunpack.c.l.b16 %v21
  %v41 = vunpack.c.l.b16 %v22
  %v42 = vunpack.c.l.b16 %v23
  %v43 = vunpack.c.l.b16 %v24
  %v44 = vpack.c.b16 %v41, %v40
  %v45 = vpack.c.b16 %v43, %v42
  %v50 = vunpack.c.l.b16 %v25
  %v51 = vunpack.c.l.b16 %v26
  %v52 = vunpack.c.l.b16 %v27
  %v53 = vunpack.c.l.b16 %v28
  %v54 = vpack.c.b16 %v51, %v50
  %v55 = vpack.c.b16 %v53, %v52
  %vm58 = vcmask 261120
  %v60 = vsel %vm58, %v44, 0
  %v63 = vsel %vm58, %v45, 0
  %65 = vmatprep.subr.bf16.mxu0 0
  %66 = vmatpush1.bf16.msra.mxu0 0
  %67 = vmatprep.subr.bf16.mxu0 0
  %68 = vmatpush1.bf16.msra.mxu0 0
  %69 = vmatprep.subr.bf16.mxu0 0
  %70 = vmatpush1.bf16.msra.mxu0 0
  %71 = vmatprep.subr.bf16.mxu0 0
  %72 = vmatpush1.bf16.msra.mxu0 0
  %73 = vmatprep.subr.bf16.mxu0 0
  %74 = vmatpush1.bf16.msra.mxu0 0
  %75 = vmatprep.subr.bf16.mxu0 0
  %76 = vmatpush1.bf16.msra.mxu0 0
  %77 = vmatprep.subr.bf16.mxu0 0
  %78 = vmatpush1.bf16.msra.mxu0 %v55
  %79 = vmatprep.subr.bf16.mxu0 0
  %80 = vmatpush1.bf16.msra.mxu0 %v54
  %81 = vmatprep.subr.bf16.mxu0 0
  %82 = vmatpush2.bf16.msra.mxu0 0
  %83 = vmatprep.subr.bf16.mxu0 0
  %84 = vmatpush2.bf16.msra.mxu0 0
  %85 = vmatprep.subr.bf16.mxu0 0
  %86 = vmatpush2.bf16.msra.mxu0 0
  %87 = vmatprep.subr.bf16.mxu0 0
  %88 = vmatpush2.bf16.msra.mxu0 0
  %89 = vmatprep.subr.bf16.mxu0 0
  %90 = vmatpush2.bf16.msra.mxu0 0
  %91 = vmatprep.subr.bf16.mxu0 0
  %92 = vmatpush2.bf16.msra.mxu0 0
  %93 = vmatprep.subr.bf16.mxu0 0
  %94 = vmatpush2.bf16.msra.mxu0 0
  %95 = vmatprep.subr.bf16.mxu0 0
  %96 = vmatpush2.bf16.msra.mxu0 0
  %97 = vmatprep.mubr.bf16.mxu0 0
  %98 = vmatmul.mubr.bf16.gmra.mxu0 %v60
  %v99 = vpop.f32.mrf.mxu0
  %v100 = vadd.f32 %v34, %v99
  %v101 = vpop.f32.mrf.mxu0
  %v102 = vpop.f32.mrf.mxu0
  %v103 = vadd.f32 %v34, %v102
  %v104 = vpop.f32.mrf.mxu0
  %105 = vmatprep.mubr.bf16.mxu0 0
  %106 = vmatmul.mubr.bf16.gmra.mxu0 %v63
  %v107 = vpop.f32.mrf.mxu0
  %v108 = vadd.f32 %v34, %v107
  %v109 = vpop.f32.mrf.mxu0
  %v110 = vpop.f32.mrf.mxu0
  %v111 = vadd.f32 %v34, %v110
  %v112 = vpop.f32.mrf.mxu0
  %113 = vdwg.mxu0
  %114 = vst [vmem:[#allocation2] sm:$0xff] %v100
  %115 = vst [vmem:[#allocation2 + $0x8] sm:$0xff] %v103
  %116 = vst [vmem:[#allocation2 + $0x10] sm:$0xff] %v108
  %117 = vst [vmem:[#allocation2 + $0x18] sm:$0xff] %v111
  %v118 = vld [vmem:[%s2] sm:$0xf]
  %v119 = vld [vmem:[%s2 + $0x4] sm:$0xf]
  %v120 = vld [vmem:[%s2 + $0x8] sm:$0xf]
  %v121 = vld [vmem:[%s2 + $0xc] sm:$0xf]
  %v122 = vld [vmem:[%s4] sm:$0x1]
  %v124 = vlaneseq
  %v125 = vshrl.u32 %v124, 7
  %v126 = vsub.s32 0, %v125
  %v127 = vrot.slane %v122, %v126
  %v132 = vunpack.c.l.b16 %v118
  %v133 = vunpack.c.l.b16 %v119
  %v134 = vunpack.c.l.b16 %v120
  %v135 = vunpack.c.l.b16 %v121
  %v136 = vpack.c.b16 %v133, %v132
  %v137 = vpack.c.b16 %v135, %v134
  %v141 = vsel %vm58, 0, 0
  %143 = vmatprep.subr.bf16.mxu0 0
  %144 = vmatpush1.bf16.msra.mxu0 0
  %145 = vmatprep.subr.bf16.mxu0 0
  %146 = vmatpush1.bf16.msra.mxu0 0
  %147 = vmatprep.subr.bf16.mxu0 0
  %148 = vmatpush1.bf16.msra.mxu0 0
  %149 = vmatprep.subr.bf16.mxu0 0
  %150 = vmatpush1.bf16.msra.mxu0 0
  %151 = vmatprep.subr.bf16.mxu0 0
  %152 = vmatpush1.bf16.msra.mxu0 0
  %153 = vmatprep.subr.bf16.mxu0 0
  %154 = vmatpush1.bf16.msra.mxu0 0
  %155 = vmatprep.subr.bf16.mxu0 0
  %156 = vmatpush1.bf16.msra.mxu0 %v137
  %157 = vmatprep.subr.bf16.mxu0 0
  %158 = vmatpush1.bf16.msra.mxu0 %v136
  %159 = vmatprep.subr.bf16.mxu0 0
  %160 = vmatpush2.bf16.msra.mxu0 0
  %161 = vmatprep.subr.bf16.mxu0 0
  %162 = vmatpush2.bf16.msra.mxu0 0
  %163 = vmatprep.subr.bf16.mxu0 0
  %164 = vmatpush2.bf16.msra.mxu0 0
  %165 = vmatprep.subr.bf16.mxu0 0
  %166 = vmatpush2.bf16.msra.mxu0 0
  %167 = vmatprep.subr.bf16.mxu0 0
  %168 = vmatpush2.bf16.msra.mxu0 0
  %169 = vmatprep.subr.bf16.mxu0 0
  %170 = vmatpush2.bf16.msra.mxu0 0
  %171 = vmatprep.subr.bf16.mxu0 0
  %172 = vmatpush2.bf16.msra.mxu0 0
  %173 = vmatprep.subr.bf16.mxu0 0
  %174 = vmatpush2.bf16.msra.mxu0 0
  %175 = vmatprep.mubr.bf16.mxu0 0
  %176 = vmatmul.mubr.bf16.gmra.mxu0 %v141
  %v177 = vpop.f32.mrf.mxu0
  %v178 = vadd.f32 0.0, %v177
  %v179 = vpop.f32.mrf.mxu0
  %v180 = vpop.f32.mrf.mxu0
  %v181 = vpop.f32.mrf.mxu0
  %182 = vdwg.mxu0
  %v183 = vld [vmem:[#allocation2] sm:$0xf]
  %v184 = vadd.f32 %v183, %v178
  %v185 = vxor.u32 %v184, 2147483648
  %v186 = vmul.f32 %v185, 1.442695
  %v187 = vpow.pop %v186
  %v188 = vadd.f32 %v187, 1.0
  %v189 = vrcp.pop %v188
  %v190 = vmul.f32 1.0, %v189
  %191 = vrot.lane.b32.xlu0 %v127, 64
  %v192 = vpop.permute.xlu0 %191
  %v194 = vadd.f32 %v178, %v192
  %196 = vrot.lane.b32.xlu0 %v194, 64
  %v197 = vpop.permute.xlu0 %196
  %v199 = vmul.f32 %v190, %v197
  %201 = vrot.lane.b32.xlu0 %v199, 64
  %v202 = vpop.permute.xlu0 %201
  %v204 = vadd.f32 %v183, %v202
  %v205 = vtanh.pop %v204
  %v206 = vsub.f32 1.0, %v190
  %208 = vrot.lane.b32.xlu0 %v205, 96
  %v209 = vpop.permute.xlu0 %208
  %v211 = vmul.f32 %v206, %v209
  %v212 = vmul.f32 %v190, 0.0
  %v213 = vadd.f32 %v211, %v212
  %215 = vrot.lane.b32.xlu0 %v213, 96
  %v216 = vpop.permute.xlu0 %215
  %vm218 = vcmask 257024
  %219 = vst.msk [vmem:[%s5] sm:$0xf] %vm218, %v216
  %v220 = vpack.c.bf16 %v213, %v213
  %222 = vrot.lane.b32.xlu0 %v220, 96
  %v223 = vpop.permute.xlu0 %222
  %v225 = vsel %vm58, %v223, 0
  %227 = vmatprep.subr.bf16.mxu0 0
  %228 = vmatpush1.bf16.msra.mxu0 0
  %229 = vmatprep.subr.bf16.mxu0 0
  %230 = vmatpush1.bf16.msra.mxu0 0
  %231 = vmatprep.subr.bf16.mxu0 0
  %232 = vmatpush1.bf16.msra.mxu0 0
  %233 = vmatprep.subr.bf16.mxu0 0
  %234 = vmatpush1.bf16.msra.mxu0 0
  %235 = vmatprep.subr.bf16.mxu0 0
  %236 = vmatpush1.bf16.msra.mxu0 0
  %237 = vmatprep.subr.bf16.mxu0 0
  %238 = vmatpush1.bf16.msra.mxu0 0
  %239 = vmatprep.subr.bf16.mxu0 0
  %240 = vmatpush1.bf16.msra.mxu0 %v137
  %241 = vmatprep.subr.bf16.mxu0 0
  %242 = vmatpush1.bf16.msra.mxu0 %v136
  %243 = vmatprep.subr.bf16.mxu0 0
  %244 = vmatpush2.bf16.msra.mxu0 0
  %245 = vmatprep.subr.bf16.mxu0 0
  %246 = vmatpush2.bf16.msra.mxu0 0
  %247 = vmatprep.subr.bf16.mxu0 0
  %248 = vmatpush2.bf16.msra.mxu0 0
  %249 = vmatprep.subr.bf16.mxu0 0
  %250 = vmatpush2.bf16.msra.mxu0 0
  %251 = vmatprep.subr.bf16.mxu0 0
  %252 = vmatpush2.bf16.msra.mxu0 0
  %253 = vmatprep.subr.bf16.mxu0 0
  %254 = vmatpush2.bf16.msra.mxu0 0
  %255 = vmatprep.subr.bf16.mxu0 0
  %256 = vmatpush2.bf16.msra.mxu0 0
  %257 = vmatprep.subr.bf16.mxu0 0
  %258 = vmatpush2.bf16.msra.mxu0 0
  %259 = vmatprep.mubr.bf16.mxu0 0
  %260 = vmatmul.mubr.bf16.gmra.mxu0 %v225
  %v261 = vpop.f32.mrf.mxu0
  %v262 = vadd.f32 0.0, %v261
  %v263 = vpop.f32.mrf.mxu0
  %v264 = vpop.f32.mrf.mxu0
  %v265 = vpop.f32.mrf.mxu0
  %266 = vdwg.mxu0
  %s267 = scalar_lea.vmem [#allocation2], 4
  %v268 = vld [vmem:[%s267] sm:$0xf]
  %v269 = vadd.f32 %v268, %v262
  %v270 = vxor.u32 %v269, 2147483648
  %v271 = vmul.f32 %v270, 1.442695
  %v272 = vpow.pop %v271
  %v273 = vadd.f32 %v272, 1.0
  %v274 = vrcp.pop %v273
  %v275 = vmul.f32 1.0, %v274
  %v276 = vadd.f32 %v262, %v192
  %278 = vrot.lane.b32.xlu0 %v276, 64
  %v279 = vpop.permute.xlu0 %278
  %v281 = vmul.f32 %v275, %v279
  %283 = vrot.lane.b32.xlu0 %v281, 64
  %v284 = vpop.permute.xlu0 %283
  %v286 = vadd.f32 %v268, %v284
  %v287 = vtanh.pop %v286
  %v288 = vsub.f32 1.0, %v275
  %290 = vrot.lane.b32.xlu0 %v287, 96
  %v291 = vpop.permute.xlu0 %290
  %v293 = vmul.f32 %v288, %v291
  %v294 = vmul.f32 %v275, %v213
  %v295 = vadd.f32 %v293, %v294
  %297 = vrot.lane.b32.xlu0 %v295, 96
  %v298 = vpop.permute.xlu0 %297
  %s300 = scalar_lea.vmem %s5, 4
  %301 = vst.msk [vmem:[%s300] sm:$0xf] %vm218, %v298
  %v302 = vpack.c.bf16 %v295, %v295
  %304 = vrot.lane.b32.xlu0 %v302, 96
  %v305 = vpop.permute.xlu0 %304
  %v307 = vsel %vm58, %v305, 0
  %309 = vmatprep.subr.bf16.mxu0 0
  %310 = vmatpush1.bf16.msra.mxu0 0
  %311 = vmatprep.subr.bf16.mxu0 0
  %312 = vmatpush1.bf16.msra.mxu0 0
  %313 = vmatprep.subr.bf16.mxu0 0
  %314 = vmatpush1.bf16.msra.mxu0 0
  %315 = vmatprep.subr.bf16.mxu0 0
  %316 = vmatpush1.bf16.msra.mxu0 0
  %317 = vmatprep.subr.bf16.mxu0 0
  %318 = vmatpush1.bf16.msra.mxu0 0
  %319 = vmatprep.subr.bf16.mxu0 0
  %320 = vmatpush1.bf16.msra.mxu0 0
  %321 = vmatprep.subr.bf16.mxu0 0
  %322 = vmatpush1.bf16.msra.mxu0 %v137
  %323 = vmatprep.subr.bf16.mxu0 0
  %324 = vmatpush1.bf16.msra.mxu0 %v136
  %325 = vmatprep.subr.bf16.mxu0 0
  %326 = vmatpush2.bf16.msra.mxu0 0
  %327 = vmatprep.subr.bf16.mxu0 0
  %328 = vmatpush2.bf16.msra.mxu0 0
  %329 = vmatprep.subr.bf16.mxu0 0
  %330 = vmatpush2.bf16.msra.mxu0 0
  %331 = vmatprep.subr.bf16.mxu0 0
  %332 = vmatpush2.bf16.msra.mxu0 0
  %333 = vmatprep.subr.bf16.mxu0 0
  %334 = vmatpush2.bf16.msra.mxu0 0
  %335 = vmatprep.subr.bf16.mxu0 0
  %336 = vmatpush2.bf16.msra.mxu0 0
  %337 = vmatprep.subr.bf16.mxu0 0
  %338 = vmatpush2.bf16.msra.mxu0 0
  %339 = vmatprep.subr.bf16.mxu0 0
  %340 = vmatpush2.bf16.msra.mxu0 0
  %341 = vmatprep.mubr.bf16.mxu0 0
  %342 = vmatmul.mubr.bf16.gmra.mxu0 %v307
  %v343 = vpop.f32.mrf.mxu0
  %v344 = vadd.f32 0.0, %v343
  %v345 = vpop.f32.mrf.mxu0
  %v346 = vpop.f32.mrf.mxu0
  %v347 = vpop.f32.mrf.mxu0
  %348 = vdwg.mxu0
  %s349 = scalar_lea.vmem [#allocation2], 8
  %v350 = vld [vmem:[%s349] sm:$0xf]
  %v351 = vadd.f32 %v350, %v344
  %v352 = vxor.u32 %v351, 2147483648
  %v353 = vmul.f32 %v352, 1.442695
  %v354 = vpow.pop %v353
  %v355 = vadd.f32 %v354, 1.0
  %v356 = vrcp.pop %v355
  %v357 = vmul.f32 1.0, %v356
  %v358 = vadd.f32 %v344, %v192
  %360 = vrot.lane.b32.xlu0 %v358, 64
  %v361 = vpop.permute.xlu0 %360
  %v363 = vmul.f32 %v357, %v361
  %365 = vrot.lane.b32.xlu0 %v363, 64
  %v366 = vpop.permute.xlu0 %365
  %v368 = vadd.f32 %v350, %v366
  %v369 = vtanh.pop %v368
  %v370 = vsub.f32 1.0, %v357
  %372 = vrot.lane.b32.xlu0 %v369, 96
  %v373 = vpop.permute.xlu0 %372
  %v375 = vmul.f32 %v370, %v373
  %v376 = vmul.f32 %v357, %v295
  %v377 = vadd.f32 %v375, %v376
  %379 = vrot.lane.b32.xlu0 %v377, 96
  %v380 = vpop.permute.xlu0 %379
  %s382 = scalar_lea.vmem %s5, 8
  %383 = vst.msk [vmem:[%s382] sm:$0xf] %vm218, %v380
  %v384 = vpack.c.bf16 %v377, %v377
  %386 = vrot.lane.b32.xlu0 %v384, 96
  %v387 = vpop.permute.xlu0 %386
  %v389 = vsel %vm58, %v387, 0
  %391 = vmatprep.subr.bf16.mxu0 0
  %392 = vmatpush1.bf16.msra.mxu0 0
  %393 = vmatprep.subr.bf16.mxu0 0
  %394 = vmatpush1.bf16.msra.mxu0 0
  %395 = vmatprep.subr.bf16.mxu0 0
  %396 = vmatpush1.bf16.msra.mxu0 0
  %397 = vmatprep.subr.bf16.mxu0 0
  %398 = vmatpush1.bf16.msra.mxu0 0
  %399 = vmatprep.subr.bf16.mxu0 0
  %400 = vmatpush1.bf16.msra.mxu0 0
  %401 = vmatprep.subr.bf16.mxu0 0
  %402 = vmatpush1.bf16.msra.mxu0 0
  %403 = vmatprep.subr.bf16.mxu0 0
  %404 = vmatpush1.bf16.msra.mxu0 %v137
  %405 = vmatprep.subr.bf16.mxu0 0
  %406 = vmatpush1.bf16.msra.mxu0 %v136
  %407 = vmatprep.subr.bf16.mxu0 0
  %408 = vmatpush2.bf16.msra.mxu0 0
  %409 = vmatprep.subr.bf16.mxu0 0
  %410 = vmatpush2.bf16.msra.mxu0 0
  %411 = vmatprep.subr.bf16.mxu0 0
  %412 = vmatpush2.bf16.msra.mxu0 0
  %413 = vmatprep.subr.bf16.mxu0 0
  %414 = vmatpush2.bf16.msra.mxu0 0
  %415 = vmatprep.subr.bf16.mxu0 0
  %416 = vmatpush2.bf16.msra.mxu0 0
  %417 = vmatprep.subr.bf16.mxu0 0
  %418 = vmatpush2.bf16.msra.mxu0 0
  %419 = vmatprep.subr.bf16.mxu0 0
  %420 = vmatpush2.bf16.msra.mxu0 0
  %421 = vmatprep.subr.bf16.mxu0 0
  %422 = vmatpush2.bf16.msra.mxu0 0
  %423 = vmatprep.mubr.bf16.mxu0 0
  %424 = vmatmul.mubr.bf16.gmra.mxu0 %v389
  %v425 = vpop.f32.mrf.mxu0
  %v426 = vadd.f32 0.0, %v425
  %v427 = vpop.f32.mrf.mxu0
  %v428 = vpop.f32.mrf.mxu0
  %v429 = vpop.f32.mrf.mxu0
  %430 = vdwg.mxu0
  %s431 = scalar_lea.vmem [#allocation2], 12
  %v432 = vld [vmem:[%s431] sm:$0xf]
  %v433 = vadd.f32 %v432, %v426
  %v434 = vxor.u32 %v433, 2147483648
  %v435 = vmul.f32 %v434, 1.442695
  %v436 = vpow.pop %v435
  %v437 = vadd.f32 %v436, 1.0
  %v438 = vrcp.pop %v437
  %v439 = vmul.f32 1.0, %v438
  %v440 = vadd.f32 %v426, %v192
  %442 = vrot.lane.b32.xlu0 %v440, 64
  %v443 = vpop.permute.xlu0 %442
  %v445 = vmul.f32 %v439, %v443
  %447 = vrot.lane.b32.xlu0 %v445, 64
  %v448 = vpop.permute.xlu0 %447
  %v450 = vadd.f32 %v432, %v448
  %v451 = vtanh.pop %v450
  %v452 = vsub.f32 1.0, %v439
  %454 = vrot.lane.b32.xlu0 %v451, 96
  %v455 = vpop.permute.xlu0 %454
  %v457 = vmul.f32 %v452, %v455
  %v458 = vmul.f32 %v439, %v377
  %v459 = vadd.f32 %v457, %v458
  %461 = vrot.lane.b32.xlu0 %v459, 96
  %v462 = vpop.permute.xlu0 %461
  %s464 = scalar_lea.vmem %s5, 12
  %465 = vst.msk [vmem:[%s464] sm:$0xf] %vm218, %v462
  %v466 = vpack.c.bf16 %v459, %v459
  %468 = vrot.lane.b32.xlu0 %v466, 96
  %v469 = vpop.permute.xlu0 %468
  %v471 = vsel %vm58, %v469, 0
  %473 = vmatprep.subr.bf16.mxu0 0
  %474 = vmatpush1.bf16.msra.mxu0 0
  %475 = vmatprep.subr.bf16.mxu0 0
  %476 = vmatpush1.bf16.msra.mxu0 0
  %477 = vmatprep.subr.bf16.mxu0 0
  %478 = vmatpush1.bf16.msra.mxu0 0
  %479 = vmatprep.subr.bf16.mxu0 0
  %480 = vmatpush1.bf16.msra.mxu0 0
  %481 = vmatprep.subr.bf16.mxu0 0
  %482 = vmatpush1.bf16.msra.mxu0 0
  %483 = vmatprep.subr.bf16.mxu0 0
  %484 = vmatpush1.bf16.msra.mxu0 0
  %485 = vmatprep.subr.bf16.mxu0 0
  %486 = vmatpush1.bf16.msra.mxu0 %v137
  %487 = vmatprep.subr.bf16.mxu0 0
  %488 = vmatpush1.bf16.msra.mxu0 %v136
  %489 = vmatprep.subr.bf16.mxu0 0
  %490 = vmatpush2.bf16.msra.mxu0 0
  %491 = vmatprep.subr.bf16.mxu0 0
  %492 = vmatpush2.bf16.msra.mxu0 0
  %493 = vmatprep.subr.bf16.mxu0 0
  %494 = vmatpush2.bf16.msra.mxu0 0
  %495 = vmatprep.subr.bf16.mxu0 0
  %496 = vmatpush2.bf16.msra.mxu0 0
  %497 = vmatprep.subr.bf16.mxu0 0
  %498 = vmatpush2.bf16.msra.mxu0 0
  %499 = vmatprep.subr.bf16.mxu0 0
  %500 = vmatpush2.bf16.msra.mxu0 0
  %501 = vmatprep.subr.bf16.mxu0 0
  %502 = vmatpush2.bf16.msra.mxu0 0
  %503 = vmatprep.subr.bf16.mxu0 0
  %504 = vmatpush2.bf16.msra.mxu0 0
  %505 = vmatprep.mubr.bf16.mxu0 0
  %506 = vmatmul.mubr.bf16.gmra.mxu0 %v471
  %v507 = vpop.f32.mrf.mxu0
  %v508 = vadd.f32 0.0, %v507
  %v509 = vpop.f32.mrf.mxu0
  %v510 = vpop.f32.mrf.mxu0
  %v511 = vpop.f32.mrf.mxu0
  %512 = vdwg.mxu0
  %s513 = scalar_lea.vmem [#allocation2], 16
  %v514 = vld [vmem:[%s513] sm:$0xf]
  %v515 = vadd.f32 %v514, %v508
  %v516 = vxor.u32 %v515, 2147483648
  %v517 = vmul.f32 %v516, 1.442695
  %v518 = vpow.pop %v517
  %v519 = vadd.f32 %v518, 1.0
  %v520 = vrcp.pop %v519
  %v521 = vmul.f32 1.0, %v520
  %v522 = vadd.f32 %v508, %v192
  %524 = vrot.lane.b32.xlu0 %v522, 64
  %v525 = vpop.permute.xlu0 %524
  %v527 = vmul.f32 %v521, %v525
  %529 = vrot.lane.b32.xlu0 %v527, 64
  %v530 = vpop.permute.xlu0 %529
  %v532 = vadd.f32 %v514, %v530
  %v533 = vtanh.pop %v532
  %v534 = vsub.f32 1.0, %v521
  %536 = vrot.lane.b32.xlu0 %v533, 96
  %v537 = vpop.permute.xlu0 %536
  %v539 = vmul.f32 %v534, %v537
  %v540 = vmul.f32 %v521, %v459
  %v541 = vadd.f32 %v539, %v540
  %543 = vrot.lane.b32.xlu0 %v541, 96
  %v544 = vpop.permute.xlu0 %543
  %s546 = scalar_lea.vmem %s5, 16
  %547 = vst.msk [vmem:[%s546] sm:$0xf] %vm218, %v544
  %v548 = vpack.c.bf16 %v541, %v541
  %550 = vrot.lane.b32.xlu0 %v548, 96
  %v551 = vpop.permute.xlu0 %550
  %v553 = vsel %vm58, %v551, 0
  %555 = vmatprep.subr.bf16.mxu0 0
  %556 = vmatpush1.bf16.msra.mxu0 0
  %557 = vmatprep.subr.bf16.mxu0 0
  %558 = vmatpush1.bf16.msra.mxu0 0
  %559 = vmatprep.subr.bf16.mxu0 0
  %560 = vmatpush1.bf16.msra.mxu0 0
  %561 = vmatprep.subr.bf16.mxu0 0
  %562 = vmatpush1.bf16.msra.mxu0 0
  %563 = vmatprep.subr.bf16.mxu0 0
  %564 = vmatpush1.bf16.msra.mxu0 0
  %565 = vmatprep.subr.bf16.mxu0 0
  %566 = vmatpush1.bf16.msra.mxu0 0
  %567 = vmatprep.subr.bf16.mxu0 0
  %568 = vmatpush1.bf16.msra.mxu0 %v137
  %569 = vmatprep.subr.bf16.mxu0 0
  %570 = vmatpush1.bf16.msra.mxu0 %v136
  %571 = vmatprep.subr.bf16.mxu0 0
  %572 = vmatpush2.bf16.msra.mxu0 0
  %573 = vmatprep.subr.bf16.mxu0 0
  %574 = vmatpush2.bf16.msra.mxu0 0
  %575 = vmatprep.subr.bf16.mxu0 0
  %576 = vmatpush2.bf16.msra.mxu0 0
  %577 = vmatprep.subr.bf16.mxu0 0
  %578 = vmatpush2.bf16.msra.mxu0 0
  %579 = vmatprep.subr.bf16.mxu0 0
  %580 = vmatpush2.bf16.msra.mxu0 0
  %581 = vmatprep.subr.bf16.mxu0 0
  %582 = vmatpush2.bf16.msra.mxu0 0
  %583 = vmatprep.subr.bf16.mxu0 0
  %584 = vmatpush2.bf16.msra.mxu0 0
  %585 = vmatprep.subr.bf16.mxu0 0
  %586 = vmatpush2.bf16.msra.mxu0 0
  %587 = vmatprep.mubr.bf16.mxu0 0
  %588 = vmatmul.mubr.bf16.gmra.mxu0 %v553
  %v589 = vpop.f32.mrf.mxu0
  %v590 = vadd.f32 0.0, %v589
  %v591 = vpop.f32.mrf.mxu0
  %v592 = vpop.f32.mrf.mxu0
  %v593 = vpop.f32.mrf.mxu0
  %594 = vdwg.mxu0
  %s595 = scalar_lea.vmem [#allocation2], 20
  %v596 = vld [vmem:[%s595] sm:$0xf]
  %v597 = vadd.f32 %v596, %v590
  %v598 = vxor.u32 %v597, 2147483648
  %v599 = vmul.f32 %v598, 1.442695
  %v600 = vpow.pop %v599
  %v601 = vadd.f32 %v600, 1.0
  %v602 = vrcp.pop %v601
  %v603 = vmul.f32 1.0, %v602
  %v604 = vadd.f32 %v590, %v192
  %606 = vrot.lane.b32.xlu0 %v604, 64
  %v607 = vpop.permute.xlu0 %606
  %v609 = vmul.f32 %v603, %v607
  %611 = vrot.lane.b32.xlu0 %v609, 64
  %v612 = vpop.permute.xlu0 %611
  %v614 = vadd.f32 %v596, %v612
  %v615 = vtanh.pop %v614
  %v616 = vsub.f32 1.0, %v603
  %618 = vrot.lane.b32.xlu0 %v615, 96
  %v619 = vpop.permute.xlu0 %618
  %v621 = vmul.f32 %v616, %v619
  %v622 = vmul.f32 %v603, %v541
  %v623 = vadd.f32 %v621, %v622
  %625 = vrot.lane.b32.xlu0 %v623, 96
  %v626 = vpop.permute.xlu0 %625
  %s628 = scalar_lea.vmem %s5, 20
  %629 = vst.msk [vmem:[%s628] sm:$0xf] %vm218, %v626
  %v630 = vpack.c.bf16 %v623, %v623
  %632 = vrot.lane.b32.xlu0 %v630, 96
  %v633 = vpop.permute.xlu0 %632
  %v635 = vsel %vm58, %v633, 0
  %637 = vmatprep.subr.bf16.mxu0 0
  %638 = vmatpush1.bf16.msra.mxu0 0
  %639 = vmatprep.subr.bf16.mxu0 0
  %640 = vmatpush1.bf16.msra.mxu0 0
  %641 = vmatprep.subr.bf16.mxu0 0
  %642 = vmatpush1.bf16.msra.mxu0 0
  %643 = vmatprep.subr.bf16.mxu0 0
  %644 = vmatpush1.bf16.msra.mxu0 0
  %645 = vmatprep.subr.bf16.mxu0 0
  %646 = vmatpush1.bf16.msra.mxu0 0
  %647 = vmatprep.subr.bf16.mxu0 0
  %648 = vmatpush1.bf16.msra.mxu0 0
  %649 = vmatprep.subr.bf16.mxu0 0
  %650 = vmatpush1.bf16.msra.mxu0 %v137
  %651 = vmatprep.subr.bf16.mxu0 0
  %652 = vmatpush1.bf16.msra.mxu0 %v136
  %653 = vmatprep.subr.bf16.mxu0 0
  %654 = vmatpush2.bf16.msra.mxu0 0
  %655 = vmatprep.subr.bf16.mxu0 0
  %656 = vmatpush2.bf16.msra.mxu0 0
  %657 = vmatprep.subr.bf16.mxu0 0
  %658 = vmatpush2.bf16.msra.mxu0 0
  %659 = vmatprep.subr.bf16.mxu0 0
  %660 = vmatpush2.bf16.msra.mxu0 0
  %661 = vmatprep.subr.bf16.mxu0 0
  %662 = vmatpush2.bf16.msra.mxu0 0
  %663 = vmatprep.subr.bf16.mxu0 0
  %664 = vmatpush2.bf16.msra.mxu0 0
  %665 = vmatprep.subr.bf16.mxu0 0
  %666 = vmatpush2.bf16.msra.mxu0 0
  %667 = vmatprep.subr.bf16.mxu0 0
  %668 = vmatpush2.bf16.msra.mxu0 0
  %669 = vmatprep.mubr.bf16.mxu0 0
  %670 = vmatmul.mubr.bf16.gmra.mxu0 %v635
  %v671 = vpop.f32.mrf.mxu0
  %v672 = vadd.f32 0.0, %v671
  %v673 = vpop.f32.mrf.mxu0
  %v674 = vpop.f32.mrf.mxu0
  %v675 = vpop.f32.mrf.mxu0
  %676 = vdwg.mxu0
  %s677 = scalar_lea.vmem [#allocation2], 24
  %v678 = vld [vmem:[%s677] sm:$0xf]
  %v679 = vadd.f32 %v678, %v672
  %v680 = vxor.u32 %v679, 2147483648
  %v681 = vmul.f32 %v680, 1.442695
  %v682 = vpow.pop %v681
  %v683 = vadd.f32 %v682, 1.0
  %v684 = vrcp.pop %v683
  %v685 = vmul.f32 1.0, %v684
  %v686 = vadd.f32 %v672, %v192
  %688 = vrot.lane.b32.xlu0 %v686, 64
  %v689 = vpop.permute.xlu0 %688
  %v691 = vmul.f32 %v685, %v689
  %693 = vrot.lane.b32.xlu0 %v691, 64
  %v694 = vpop.permute.xlu0 %693
  %v696 = vadd.f32 %v678, %v694
  %v697 = vtanh.pop %v696
  %v698 = vsub.f32 1.0, %v685
  %700 = vrot.lane.b32.xlu0 %v697, 96
  %v701 = vpop.permute.xlu0 %700
  %v703 = vmul.f32 %v698, %v701
  %v704 = vmul.f32 %v685, %v623
  %v705 = vadd.f32 %v703, %v704
  %707 = vrot.lane.b32.xlu0 %v705, 96
  %v708 = vpop.permute.xlu0 %707
  %s710 = scalar_lea.vmem %s5, 24
  %711 = vst.msk [vmem:[%s710] sm:$0xf] %vm218, %v708
  %v712 = vpack.c.bf16 %v705, %v705
  %714 = vrot.lane.b32.xlu0 %v712, 96
  %v715 = vpop.permute.xlu0 %714
  %v717 = vsel %vm58, %v715, 0
  %719 = vmatprep.subr.bf16.mxu0 0
  %720 = vmatpush1.bf16.msra.mxu0 0
  %721 = vmatprep.subr.bf16.mxu0 0
  %722 = vmatpush1.bf16.msra.mxu0 0
  %723 = vmatprep.subr.bf16.mxu0 0
  %724 = vmatpush1.bf16.msra.mxu0 0
  %725 = vmatprep.subr.bf16.mxu0 0
  %726 = vmatpush1.bf16.msra.mxu0 0
  %727 = vmatprep.subr.bf16.mxu0 0
  %728 = vmatpush1.bf16.msra.mxu0 0
  %729 = vmatprep.subr.bf16.mxu0 0
  %730 = vmatpush1.bf16.msra.mxu0 0
  %731 = vmatprep.subr.bf16.mxu0 0
  %732 = vmatpush1.bf16.msra.mxu0 %v137
  %733 = vmatprep.subr.bf16.mxu0 0
  %734 = vmatpush1.bf16.msra.mxu0 %v136
  %735 = vmatprep.subr.bf16.mxu0 0
  %736 = vmatpush2.bf16.msra.mxu0 0
  %737 = vmatprep.subr.bf16.mxu0 0
  %738 = vmatpush2.bf16.msra.mxu0 0
  %739 = vmatprep.subr.bf16.mxu0 0
  %740 = vmatpush2.bf16.msra.mxu0 0
  %741 = vmatprep.subr.bf16.mxu0 0
  %742 = vmatpush2.bf16.msra.mxu0 0
  %743 = vmatprep.subr.bf16.mxu0 0
  %744 = vmatpush2.bf16.msra.mxu0 0
  %745 = vmatprep.subr.bf16.mxu0 0
  %746 = vmatpush2.bf16.msra.mxu0 0
  %747 = vmatprep.subr.bf16.mxu0 0
  %748 = vmatpush2.bf16.msra.mxu0 0
  %749 = vmatprep.subr.bf16.mxu0 0
  %750 = vmatpush2.bf16.msra.mxu0 0
  %751 = vmatprep.mubr.bf16.mxu0 0
  %752 = vmatmul.mubr.bf16.gmra.mxu0 %v717
  %v753 = vpop.f32.mrf.mxu0
  %v754 = vadd.f32 0.0, %v753
  %v755 = vpop.f32.mrf.mxu0
  %v756 = vpop.f32.mrf.mxu0
  %v757 = vpop.f32.mrf.mxu0
  %758 = vdwg.mxu0
  %s759 = scalar_lea.vmem [#allocation2], 28
  %v760 = vld [vmem:[%s759] sm:$0xf]
  %v761 = vadd.f32 %v760, %v754
  %v762 = vxor.u32 %v761, 2147483648
  %v763 = vmul.f32 %v762, 1.442695
  %v764 = vpow.pop %v763
  %v765 = vadd.f32 %v764, 1.0
  %v766 = vrcp.pop %v765
  %v767 = vmul.f32 1.0, %v766
  %v768 = vadd.f32 %v754, %v192
  %770 = vrot.lane.b32.xlu0 %v768, 64
  %v771 = vpop.permute.xlu0 %770
  %v773 = vmul.f32 %v767, %v771
  %775 = vrot.lane.b32.xlu0 %v773, 64
  %v776 = vpop.permute.xlu0 %775
  %v778 = vadd.f32 %v760, %v776
  %v779 = vtanh.pop %v778
  %v780 = vsub.f32 1.0, %v767
  %782 = vrot.lane.b32.xlu0 %v779, 96
  %v783 = vpop.permute.xlu0 %782
  %v785 = vmul.f32 %v780, %v783
  %v786 = vmul.f32 %v767, %v705
  %v787 = vadd.f32 %v785, %v786
  %789 = vrot.lane.b32.xlu0 %v787, 96
  %v790 = vpop.permute.xlu0 %789
  %s792 = scalar_lea.vmem %s5, 28
  %793 = vst.msk [vmem:[%s792] sm:$0xf] %vm218, %v790
  // Predicated region
  $region22: #{encoder_rnn_forward.1} parent=0 // pred_check
    _
  $region23: #{encoder_rnn_forward.1} parent=0 // pred_check_branch
    %795 = sbr.rel (0) target = $region25
  $region24: #{encoder_rnn_forward.1} parent=0 // pred_region
    _
  $region25: #{encoder_rnn_forward.1} parent=0 // pred_fallthru
    _
  // Predicated region
  $region26: #{encoder_rnn_forward.1} parent=0 // pred_check
    _
  $region27: #{encoder_rnn_forward.1} parent=0 // pred_check_branch
    %797 = sbr.rel (0) target = $region29
  $region28: #{encoder_rnn_forward.1} parent=0 // pred_region
    _
  $region29: #{encoder_rnn_forward.1} parent=0 // pred_fallthru
    _

</llo_original>
